<compile_context>
chip_gen: v5e
topology: v5e:2x2
jax: 0.10.0
libtpu: 0.0.40
codegen_flags: <defaults>
</compile_context>

<pallas_src>
import functools

import jax
import jax.numpy as jnp
from jax import lax
from jax.experimental import pallas as pl
from jax.experimental.pallas import tpu as pltpu


# ----------------------------------------------------------------------------
# Pass 1: per-(bc, t-tile) max of W @ X_tile. Output is a tiny lane-aligned
# (1, 1, 8, 128) block per grid step filled with that tile's max.
# ----------------------------------------------------------------------------
def _pinv_max_kernel(w_ref, x_ref, mx_ref, *, tile_t, total_t, ragged):
    # w_ref : (n_stft, n_mels)    VMEM (constant index_map -> stays resident)
    # x_ref : (1, n_mels, tile_t) VMEM
    # mx_ref: (1, 1, 8, 128)      VMEM, disjoint per grid step -> parallel-safe
    y = jnp.dot(w_ref[...], x_ref[0], preferred_element_type=jnp.float32)
    if ragged:
        # Columns beyond the real T come from unspecified OOB block reads;
        # mask them to -inf so they cannot poison the global max (this also
        # keeps all-negative inputs correct, unlike zero padding).
        t = pl.program_id(1)
        col = lax.broadcasted_iota(jnp.int32, y.shape, 1) + t * tile_t
        y = jnp.where(col < total_t, y, -jnp.inf)
    mx_ref[...] = jnp.full(mx_ref.shape, jnp.max(y), dtype=jnp.float32)


# ----------------------------------------------------------------------------
# Pass 2: recompute W @ X_tile, scale by 1/global_max, store DIRECTLY in the
# final [BC, n_stft, T] layout (no wrapper-side transpose of the big output).
# Ragged-tail OOB columns are dropped by Pallas on store.
# ----------------------------------------------------------------------------
def _pinv_scale_kernel(inv_ref, w_ref, x_ref, o_ref):
    # inv_ref: (1,) SMEM scalar = 1 / global_max (reciprocal hoisted to wrapper)
    y = jnp.dot(w_ref[...], x_ref[0], preferred_element_type=jnp.float32)
    o_ref[0] = (y * inv_ref[0]).astype(o_ref.dtype)


def pinv_forward(melspec, w_pinv, *, tile_t_cap=4096):
    """melspec: [B, C, n_mels, T] f32;  w_pinv: [n_stft, n_mels] f32."""
    B, C, n_mels, T = melspec.shape
    n_stft = w_pinv.shape[0]
    BC = B * C

    # Free reshape (no data movement): grid runs over (bc, t-tile) and the
    # output is produced directly in [BC, n_stft, T].
    x3 = melspec.reshape(BC, n_mels, T)

    # Tile only the time axis. Whole T per step when it fits the VMEM budget
    # (block then equals the full dim, so any T is legal); otherwise
    # 128-multiple tiles with the ragged tail handled in-kernel.
    tile_t = T if T <= tile_t_cap else tile_t_cap  # cap is a multiple of 128
    num_t = pl.cdiv(T, tile_t)
    ragged = (T % tile_t) != 0

    w_spec = pl.BlockSpec((n_stft, n_mels), lambda b, t: (0, 0))  # W resident, K whole
    x_spec = pl.BlockSpec((1, n_mels, tile_t), lambda b, t: (b, 0, t))
    params = pltpu.CompilerParams(dimension_semantics=("parallel", "parallel"))

    # ---- pass 1: per-tile maxes (tiny output, no serial accumulator) ----
    max_kernel = functools.partial(
        _pinv_max_kernel, tile_t=tile_t, total_t=T, ragged=ragged)
    partial_max = pl.pallas_call(
        max_kernel,
        out_shape=jax.ShapeDtypeStruct((BC, num_t, 8, 128), jnp.float32),
        grid=(BC, num_t),
        in_specs=[w_spec, x_spec],
        out_specs=pl.BlockSpec((1, 1, 8, 128), lambda b, t: (b, t, 0, 0)),
        compiler_params=params,
    )(w_pinv, x3)

    # Tiny global reduction + hoisted reciprocal in plain XLA.
    # NOTE: unguarded division, matching the PyTorch reference (NaN/Inf if max==0).
    inv = (1.0 / jnp.max(partial_max)).reshape(1).astype(jnp.float32)

    # ---- pass 2: recompute matmul, scale, single lane-dense store in final layout ----
    y = pl.pallas_call(
        _pinv_scale_kernel,
        out_shape=jax.ShapeDtypeStruct((BC, n_stft, T), jnp.float32),
        grid=(BC, num_t),
        in_specs=[pl.BlockSpec(memory_space=pltpu.SMEM), w_spec, x_spec],
        out_specs=pl.BlockSpec((1, n_stft, tile_t), lambda b, t: (b, 0, t)),
        compiler_params=params,
    )(inv, w_pinv, x3)

    return y.reshape(B, C, n_stft, T)  # free reshape, no transpose


# ----------------------------------------------------------------------------
# Deterministic synthetic mel filterbank (triangular filters), like
# librosa.filters.mel would provide inside PInvBlock.__init__.
# ----------------------------------------------------------------------------
def make_melfb(n_mels, n_stft):
    freqs = jnp.linspace(0.0, 1.0, n_stft)
    centers = jnp.linspace(0.0, 1.0, n_mels + 2)
    lower = centers[:-2][:, None]
    center = centers[1:-1][:, None]
    upper = centers[2:][:, None]
    up = (freqs[None, :] - lower) / (center - lower)
    down = (upper - freqs[None, :]) / (upper - center)
    fb = jnp.maximum(0.0, jnp.minimum(up, down))
    return fb.astype(jnp.float32)  # [n_mels, n_stft]


if __name__ == "__main__":
    # Small shapes consistent with the forward: melspec [B, C, n_mels, T].
    B, C, n_mels, T = 2, 2, 32, 80
    n_stft = 128

    key = jax.random.PRNGKey(0)
    melspec = jax.random.uniform(key, (B, C, n_mels, T), dtype=jnp.float32)

    melfb = make_melfb(n_mels, n_stft)      # [n_mels, n_stft]
    w_pinv = jnp.linalg.pinv(melfb)         # [n_stft, n_mels] (glue, as in __init__)

    out = jax.block_until_ready(pinv_forward(melspec, w_pinv))

    # Pure-JAX reference for sanity
    ref_x = jnp.einsum("sm,bcmt->bcst", w_pinv, melspec)
    ref = ref_x / jnp.max(ref_x)
    assert out.shape == (B, C, n_stft, T)
    assert jnp.allclose(out, ref, atol=1e-5, rtol=1e-5), float(jnp.max(jnp.abs(out - ref)))

    print("KERNEL_OK")
</pallas_src>

<mosaic_0001>
module attributes {stable_mosaic.version = 11 : i64} {
  func.func @_pinv_max_kernel(%arg0: i32, %arg1: i32, %arg2: memref<128x32xf32, #tpu.memory_space<vmem>>, %arg3: memref<1x32x80xf32, #tpu.memory_space<vmem>>, %arg4: memref<1x1x8x128xf32, #tpu.memory_space<vmem>>) attributes {dimension_semantics = [#tpu.dimension_semantics<parallel>, #tpu.dimension_semantics<parallel>], iteration_bounds = array<i64: 4, 1>, scalar_prefetch = 0 : i64, scratch_operands = 0 : i64, tpu.core_type = #tpu.core_type<tc>, window_params = [{pipeline_mode = #tpu.pipeline_mode<synchronous>, transform_indices = @transform_0, window_bounds = array<i64: 128, 32>}, {transform_indices = @transform_1, window_bounds = array<i64: 1, 32, 80>}, {transform_indices = @transform_2, window_bounds = array<i64: 1, 1, 8, 128>}]} {
    %c0 = arith.constant 0 : index
    %c0_0 = arith.constant 0 : index
    %0 = vector.load %arg2[%c0, %c0_0] : memref<128x32xf32, #tpu.memory_space<vmem>>, vector<128x32xf32>
    %c0_1 = arith.constant 0 : index
    %c0_2 = arith.constant 0 : index
    %c0_3 = arith.constant 0 : index
    %1 = vector.load %arg3[%c0_1, %c0_2, %c0_3] : memref<1x32x80xf32, #tpu.memory_space<vmem>>, vector<1x32x80xf32>
    %2 = vector.shape_cast %1 : vector<1x32x80xf32> to vector<32x80xf32>
    %cst = arith.constant dense<0.000000e+00> : vector<128x80xf32>
    %3 = tpu.matmul %0, %2, %cst {dimension_numbers = #tpu.dot_dimension_numbers<[1], [0], [0], [1], [0, 0, 1, 1], [], []>} : vector<128x32xf32>, vector<32x80xf32>, vector<128x80xf32> -> vector<128x80xf32>
    %4 = vector.shape_cast %3 : vector<128x80xf32> to vector<1x128x80xf32>
    %cst_4 = arith.constant dense<0xFF800000> : vector<1xf32>
    %5 = vector.multi_reduction <maximumf>, %4, %cst_4 [1, 2] : vector<1x128x80xf32> to vector<1xf32>
    %6 = vector.shape_cast %5 : vector<1xf32> to vector<1x1x1xf32>
    %7 = vector.extract %6[0, 0, 0] : f32 from vector<1x1x1xf32>
    %8 = vector.broadcast %7 : f32 to vector<1x1x8x128xf32>
    %c0_5 = arith.constant 0 : index
    %c0_6 = arith.constant 0 : index
    %c0_7 = arith.constant 0 : index
    %c0_8 = arith.constant 0 : index
    %9 = vector.load %arg4[%c0_5, %c0_6, %c0_7, %c0_8] : memref<1x1x8x128xf32, #tpu.memory_space<vmem>>, vector<1x1x8x128xf32>
    tpu.vector_store %arg4[%c0_5, %c0_6, %c0_7, %c0_8], %8 {strides = array<i32>} : memref<1x1x8x128xf32, #tpu.memory_space<vmem>>, vector<1x1x8x128xf32>,
    return
  }
  func.func @transform_0(%arg0: i32, %arg1: i32) -> (i32, i32) {
    %c0_i32 = arith.constant 0 : i32
    %c0_i32_0 = arith.constant 0 : i32
    %c0_i32_1 = arith.constant 0 : i32
    return %c0_i32, %c0_i32_0 : i32, i32
  }
  func.func @transform_1(%arg0: i32, %arg1: i32) -> (i32, i32, i32) {
    %c0_i32 = arith.constant 0 : i32
    %c0_i32_0 = arith.constant 0 : i32
    return %arg0, %c0_i32, %arg1 : i32, i32, i32
  }
  func.func @transform_2(%arg0: i32, %arg1: i32) -> (i32, i32, i32, i32) {
    %c0_i32 = arith.constant 0 : i32
    %c0_i32_0 = arith.constant 0 : i32
    %c0_i32_1 = arith.constant 0 : i32
    return %arg0, %arg1, %c0_i32, %c0_i32_0 : i32, i32, i32, i32
  }
}

</mosaic_0001>

<llo_original>
// kernel: tpu_custom_call.1
$region0: #{tpu_custom_call.1}
  #allocation0 [shape = 'u32[]', space=smem, size = 0x4, offset = 0x4, fixed_abs, tag = 'smem constant byte address 0x4 - core index']
  #allocation1 [shape = 'u32[72,128]{1,0:T(1,128)}', space=vmem, size = 0x9000, scoped, tag = 'internal scratch']
  %s0 = inlined_call_operand.vmem [shape: f32[128,32], index: 0, kind: input, shape index: {}]
  %s1 = inlined_call_operand.vmem [shape: f32[4,32,80], index: 1, kind: input, shape index: {}]
  %s2 = inlined_call_operand.hbm [shape: f32[4,1,8,128], index: 2, kind: output, shape index: {}]
  %s3 = sld [smem:[#allocation0]]
  $region41: #{tpu_custom_call.1} parent=0
    _
  %s5 = ssub.s32 1, %s3
  %s6 = scalar_select 0, %s5, %s3
  $region1: #{tpu_custom_call.1} parent=0
    #allocation2 [shape = 'u8[8192]{0}', space=vmem, size = 0x2000, scoped, tag = 'output window, operand 0']
    #allocation3 [shape = 's32[2]{0}', space=sflag, size = 0x8, scoped, tag = 'scoped memory for tpu_custom_call.1']
    %7 = vsyncpa [#allocation3], 0
    %s8 = scalar_lea.sflag [#allocation3], 1
    %9 = vsyncpa %s8, 0
    loop: start=0, step=1, limit=6
    $region2: #{tpu_custom_call.1} parent=1 // loop_pre_header
      _
    $region3: #{tpu_custom_call.1} parent=1 // loop_header
      %s11 = sphi 0, %s15
      %p12 = scmp.ge.s32.totalorder %s11, 6
      %s18 = sphi 0, %s30
      %s19 = sphi 0, %s26
      %s20 = sphi 0, %s18
      %s21 = sphi 0, %s19
      %s22 = sphi 0, %s20
      %s23 = sphi 0, %s21
      %s31 = sphi 0, %s31
      %s33 = sphi 0, %s31
      %s34 = sphi 0, %s33
      %s48 = sphi 0, %s34
      %s56 = sphi 0, %s58
      %s59 = sphi 0, %s56
      %s60 = sphi 0, %s59
      %s76 = sphi 0, %s60
      %s84 = sphi 0, %s86
      %s87 = sphi 0, %s84
      %s88 = sphi 0, %s87
      %s104 = sphi 0, %s88
    $region4: #{tpu_custom_call.1} parent=1 // loop_header_branch
      %14 = sbr.rel (%p12) target = $region8
    $region5: #{tpu_custom_call.1} parent=1 // loop_body
      %s16 = ssub.s32 %s11, 1
      %s17 = ssub.s32 %s11, 2
      %s24 = sadd.s32 1, %s19
      %p25 = scmp.ge.s32.totalorder %s24, 1
      %s26 = scalar_select %p25, 0, %s24
      %s27 = sadd.s32 1, %s18
      %s28 = scalar_select %p25, %s27, %s18
      %p29 = scmp.ge.s32.totalorder %s28, 4
      %s30 = scalar_select %p29, 0, %s28
      %s32 = sadd.s32 %s31, 1
      %p35 = scmp.eq.s32.totalorder %s11, 3
      %p36 = scmp.ne.s32.totalorder %s31, %s33
      %p37 = scmp.eq.s32.totalorder %s11, 0
      %p38 = por %p36, %p37
      %p39 = scmp.ne.s32.totalorder %s31, %s33
      %p40 = scmp.eq.s32.totalorder %s16, 3
      %p41 = por %p39, %p40
      %p42 = scmp.ne.s32.totalorder %s33, %s34
      %p43 = scmp.eq.s32.totalorder %s16, 0
      %p44 = por %p42, %p43
      %p45 = scmp.ne.s32.totalorder %s33, %s34
      %p46 = scmp.eq.s32.totalorder %s17, 3
      %p47 = por %p45, %p46
      %p49 = scmp.ne.s32.totalorder %s34, %s48
      %p50 = scmp.eq.s32.totalorder %s17, 0
      %p51 = por %p49, %p50
      %s52 = ssub.s32 %s18, %s30
      %s53 = ssub.s32 %s19, %s26
      %s54 = sor.u32 %s52, %s53
      %p55 = scmp.eq.s32.totalorder %s54, 0
      %s57 = sadd.s32 %s56, 1
      %s58 = scalar_select %p55, %s56, %s57
      %p61 = pneg %p55
      %p62 = scmp.eq.s32.totalorder %s11, 3
      %p63 = por %p61, %p62
      %p64 = scmp.ne.s32.totalorder %s56, %s59
      %p65 = scmp.eq.s32.totalorder %s11, 0
      %p66 = por %p64, %p65
      %p67 = scmp.ne.s32.totalorder %s56, %s59
      %p68 = scmp.eq.s32.totalorder %s16, 3
      %p69 = por %p67, %p68
      %p70 = scmp.ne.s32.totalorder %s59, %s60
      %p71 = scmp.eq.s32.totalorder %s16, 0
      %p72 = por %p70, %p71
      %p73 = scmp.ne.s32.totalorder %s59, %s60
      %p74 = scmp.eq.s32.totalorder %s17, 3
      %p75 = por %p73, %p74
      %p77 = scmp.ne.s32.totalorder %s60, %s76
      %p78 = scmp.eq.s32.totalorder %s17, 0
      %p79 = por %p77, %p78
      %s80 = ssub.s32 %s18, %s30
      %s81 = ssub.s32 %s19, %s26
      %s82 = sor.u32 %s80, %s81
      %p83 = scmp.eq.s32.totalorder %s82, 0
      %s85 = sadd.s32 %s84, 1
      %s86 = scalar_select %p83, %s84, %s85
      %p89 = pneg %p83
      %p90 = scmp.eq.s32.totalorder %s11, 3
      %p91 = por %p89, %p90
      %p92 = scmp.ne.s32.totalorder %s84, %s87
      %p93 = scmp.eq.s32.totalorder %s11, 0
      %p94 = por %p92, %p93
      %p95 = scmp.ne.s32.totalorder %s84, %s87
      %p96 = scmp.eq.s32.totalorder %s16, 3
      %p97 = por %p95, %p96
      %p98 = scmp.ne.s32.totalorder %s87, %s88
      %p99 = scmp.eq.s32.totalorder %s16, 0
      %p100 = por %p98, %p99
      %p101 = scmp.ne.s32.totalorder %s87, %s88
      %p102 = scmp.eq.s32.totalorder %s17, 3
      %p103 = por %p101, %p102
      %p105 = scmp.ne.s32.totalorder %s88, %s104
      %p106 = scmp.eq.s32.totalorder %s17, 0
      %p107 = por %p105, %p106
      %p108 = scmp.le.s32.totalorder 1, %s11
      %p109 = scmp.lt.s32.totalorder %s11, 5
      %p110 = pnand %p108, %p109
      %p111 = pneg %p110
      // Predicated region
      $region9: #{tpu_custom_call.1} parent=5 // pred_check
        _
      $region10: #{tpu_custom_call.1} parent=5 // pred_check_branch
        %113 = sbr.rel (%p110) target = $region12
      $region11: #{tpu_custom_call.1} parent=5 // pred_region
        %s114 = ssub.s32 %s11, 1
        // Predicated region
        $region13: #{tpu_custom_call.1} parent=11 // pred_check
          %p115 = pneg %p44
        $region14: #{tpu_custom_call.1} parent=11 // pred_check_branch
          %117 = sbr.rel (%p115) target = $region16
        $region15: #{tpu_custom_call.1} parent=11 // pred_region
          _
        $region16: #{tpu_custom_call.1} parent=11 // pred_fallthru
          _
      $region12: #{tpu_custom_call.1} parent=5 // pred_fallthru
        _
      %p118 = scmp.lt.s32.totalorder %s11, 4
      // Predicated region
      $region17: #{tpu_custom_call.1} parent=5 // pred_check
        %p119 = pneg %p118
      $region18: #{tpu_custom_call.1} parent=5 // pred_check_branch
        %121 = sbr.rel (%p119) target = $region20
      $region19: #{tpu_custom_call.1} parent=5 // pred_region
        // Predicated region
        $region21: #{tpu_custom_call.1} parent=19 // pred_check
          %p122 = pneg %p66
        $region22: #{tpu_custom_call.1} parent=19 // pred_check_branch
          %124 = sbr.rel (%p122) target = $region24
        $region23: #{tpu_custom_call.1} parent=19 // pred_region
          %p125 = scmp.lt.s32.totalorder %s18, 3
          %s126 = scalar_select %p125, %s18, 3
          %p127 = scmp.lt.s32.totalorder %s19, 0
          %s128 = scalar_select %p127, %s19, 0
          %s129 = smul.addr %s126, 4
          %s130 = sadd.s32 %s128, %s129
          %s131 = smul.addr %s130, 8
          %s132 = scalar_lea.vmem %s1, %s131
        $region24: #{tpu_custom_call.1} parent=19 // pred_fallthru
          _
      $region20: #{tpu_custom_call.1} parent=5 // pred_fallthru
        _
      %p133 = scmp.le.s32.totalorder 1, %s11
      %p134 = scmp.lt.s32.totalorder %s11, 5
      %p135 = pnand %p133, %p134
      %p136 = pneg %p135
      // Predicated region
      $region25: #{tpu_custom_call.1} parent=5 // pred_check
        _
      $region26: #{tpu_custom_call.1} parent=5 // pred_check_branch
        %138 = sbr.rel (%p135) target = $region28
      $region27: #{tpu_custom_call.1} parent=5 // pred_region
        %s139 = ssub.s32 %s11, 1
        %p140 = pneg %p44
        %p141 = pneg %p41
        %p142 = scmp.lt.s32.totalorder %s20, 3
        %s143 = scalar_select %p142, %s20, 3
        %p144 = scmp.lt.s32.totalorder %s21, 0
        %s145 = scalar_select %p144, %s21, 0
        %s146 = smul.addr %s143, 4
        %s147 = sadd.s32 %s145, %s146
        %s148 = smul.addr %s147, 8
        %s149 = scalar_lea.vmem %s1, %s148
        %p150 = pneg %p72
        %p151 = pneg %p69
        %p152 = pneg %p100
        %p153 = pneg %p97
        %s154 = sand.u32 %s87, 1
        %s155 = scalar_lea.sflag [#allocation3], %s154
        %s156 = sand.u32 %s87, 1
        %s157 = smul.addr %s156, 8
        %s158 = scalar_lea.vmem [#allocation2], %s157
        %p159 = scmp.lt.s32.totalorder %s20, 3
        %s160 = scalar_select %p159, %s20, 3
        %p161 = scmp.lt.s32.totalorder %s21, 0
        %s162 = scalar_select %p161, %s21, 0
        %s163 = smul.addr %s160, 4
        %s164 = sadd.s32 %s162, %s163
        %s165 = smul.addr %s164, 8
        %s166 = scalar_lea.vmem %s1, %s165
        %v167 = vld [vmem:[%s0] sm:$0xff]
        %v168 = vld [vmem:[%s0 + $0x8] sm:$0xff]
        %v169 = vld [vmem:[%s0 + $0x10] sm:$0xff]
        %v170 = vld [vmem:[%s0 + $0x18] sm:$0xff]
        %v171 = vld [vmem:[%s0 + $0x20] sm:$0xff]
        %v172 = vld [vmem:[%s0 + $0x28] sm:$0xff]
        %v173 = vld [vmem:[%s0 + $0x30] sm:$0xff]
        %v174 = vld [vmem:[%s0 + $0x38] sm:$0xff]
        %v175 = vld [vmem:[%s0 + $0x40] sm:$0xff]
        %v176 = vld [vmem:[%s0 + $0x48] sm:$0xff]
        %v177 = vld [vmem:[%s0 + $0x50] sm:$0xff]
        %v178 = vld [vmem:[%s0 + $0x58] sm:$0xff]
        %v179 = vld [vmem:[%s0 + $0x60] sm:$0xff]
        %v180 = vld [vmem:[%s0 + $0x68] sm:$0xff]
        %v181 = vld [vmem:[%s0 + $0x70] sm:$0xff]
        %v182 = vld [vmem:[%s0 + $0x78] sm:$0xff]
        %v183 = vld [vmem:[%s166] sm:$0xff]
        %v184 = vld [vmem:[%s166 + $0x8] sm:$0xff]
        %v185 = vld [vmem:[%s166 + $0x10] sm:$0xff]
        %v186 = vld [vmem:[%s166 + $0x18] sm:$0xff]
        %vm187 = vcmask 261120
        %v189 = vsel %vm187, %v167, 0
        %v192 = vsel %vm187, %v168, 0
        %v195 = vsel %vm187, %v169, 0
        %v198 = vsel %vm187, %v170, 0
        %v201 = vsel %vm187, %v171, 0
        %v204 = vsel %vm187, %v172, 0
        %v207 = vsel %vm187, %v173, 0
        %v210 = vsel %vm187, %v174, 0
        %v213 = vsel %vm187, %v175, 0
        %v216 = vsel %vm187, %v176, 0
        %v219 = vsel %vm187, %v177, 0
        %v222 = vsel %vm187, %v178, 0
        %v225 = vsel %vm187, %v179, 0
        %v228 = vsel %vm187, %v180, 0
        %v231 = vsel %vm187, %v181, 0
        %v234 = vsel %vm187, %v182, 0
        %236 = vmatpush.msra.mxu0 0.0
        %237 = vmatpush.msra.mxu0 0.0
        %238 = vmatpush.msra.mxu0 0.0
        %239 = vmatpush.msra.mxu0 0.0
        %240 = vmatpush.msra.mxu0 0.0
        %241 = vmatpush.msra.mxu0 0.0
        %242 = vmatpush.msra.mxu0 0.0
        %243 = vmatpush.msra.mxu0 0.0
        %244 = vmatpush.msra.mxu0 0.0
        %245 = vmatpush.msra.mxu0 0.0
        %246 = vmatpush.msra.mxu0 0.0
        %247 = vmatpush.msra.mxu0 0.0
        %248 = vmatpush.msra.mxu0 %v186
        %249 = vmatpush.msra.mxu0 %v185
        %250 = vmatpush.msra.mxu0 %v184
        %251 = vmatpush.msra.mxu0 %v183
        %252 = vmatmul.f32.gmra.mxu0 %v189
        %v253 = vpop.f32.mrf.mxu0
        %v254 = vadd.f32 0.0, %v253
        %255 = vmatmul.f32.gmra.mxu0 %v192
        %v256 = vpop.f32.mrf.mxu0
        %v257 = vadd.f32 0.0, %v256
        %258 = vmatmul.f32.gmra.mxu0 %v195
        %v259 = vpop.f32.mrf.mxu0
        %v260 = vadd.f32 0.0, %v259
        %261 = vmatmul.f32.gmra.mxu0 %v198
        %v262 = vpop.f32.mrf.mxu0
        %v263 = vadd.f32 0.0, %v262
        %264 = vmatmul.f32.gmra.mxu0 %v201
        %v265 = vpop.f32.mrf.mxu0
        %v266 = vadd.f32 0.0, %v265
        %267 = vmatmul.f32.gmra.mxu0 %v204
        %v268 = vpop.f32.mrf.mxu0
        %v269 = vadd.f32 0.0, %v268
        %270 = vmatmul.f32.gmra.mxu0 %v207
        %v271 = vpop.f32.mrf.mxu0
        %v272 = vadd.f32 0.0, %v271
        %273 = vmatmul.f32.gmra.mxu0 %v210
        %v274 = vpop.f32.mrf.mxu0
        %v275 = vadd.f32 0.0, %v274
        %276 = vmatmul.f32.gmra.mxu0 %v213
        %v277 = vpop.f32.mrf.mxu0
        %v278 = vadd.f32 0.0, %v277
        %279 = vmatmul.f32.gmra.mxu0 %v216
        %v280 = vpop.f32.mrf.mxu0
        %v281 = vadd.f32 0.0, %v280
        %282 = vmatmul.f32.gmra.mxu0 %v219
        %v283 = vpop.f32.mrf.mxu0
        %v284 = vadd.f32 0.0, %v283
        %285 = vmatmul.f32.gmra.mxu0 %v222
        %v286 = vpop.f32.mrf.mxu0
        %v287 = vadd.f32 0.0, %v286
        %288 = vmatmul.f32.gmra.mxu0 %v225
        %v289 = vpop.f32.mrf.mxu0
        %v290 = vadd.f32 0.0, %v289
        %291 = vmatmul.f32.gmra.mxu0 %v228
        %v292 = vpop.f32.mrf.mxu0
        %v293 = vadd.f32 0.0, %v292
        %294 = vmatmul.f32.gmra.mxu0 %v231
        %v295 = vpop.f32.mrf.mxu0
        %v296 = vadd.f32 0.0, %v295
        %297 = vmatmul.f32.gmra.mxu0 %v234
        %v298 = vpop.f32.mrf.mxu0
        %v299 = vadd.f32 0.0, %v298
        %300 = vdwg.mxu0
        %vm301 = vcmask 654336
        %v302 = vsel %vm301, %v254, -inf
        %v303 = vsel %vm301, %v257, -inf
        %v304 = vsel %vm301, %v260, -inf
        %v305 = vsel %vm301, %v263, -inf
        %v306 = vsel %vm301, %v266, -inf
        %v307 = vmax.f32 %v302, %v306
        %v308 = vsel %vm301, %v269, -inf
        %v309 = vmax.f32 %v303, %v308
        %v310 = vsel %vm301, %v272, -inf
        %v311 = vmax.f32 %v304, %v310
        %v312 = vsel %vm301, %v275, -inf
        %v313 = vmax.f32 %v305, %v312
        %v314 = vsel %vm301, %v278, -inf
        %v315 = vmax.f32 %v307, %v314
        %v316 = vsel %vm301, %v281, -inf
        %v317 = vmax.f32 %v309, %v316
        %v318 = vsel %vm301, %v284, -inf
        %v319 = vmax.f32 %v311, %v318
        %v320 = vsel %vm301, %v287, -inf
        %v321 = vmax.f32 %v313, %v320
        %v322 = vsel %vm301, %v290, -inf
        %v323 = vmax.f32 %v315, %v322
        %v324 = vsel %vm301, %v293, -inf
        %v325 = vmax.f32 %v317, %v324
        %v326 = vsel %vm301, %v296, -inf
        %v327 = vmax.f32 %v319, %v326
        %v328 = vsel %vm301, %v299, -inf
        %v329 = vmax.f32 %v321, %v328
        %v330 = vmax.f32 %v323, %v325
        %v331 = vmax.f32 %v327, %v329
        %v332 = vmax.f32 %v330, %v331
        %333 = vmax.xlane.f32.xlu0 %v332
        %v334 = vpop.xlane.xlu0 %333
        %v335 = vrot.slane %v334, 4
        %v336 = vmax.f32 %v334, %v335
        %v337 = vrot.slane %v336, 2
        %v338 = vmax.f32 %v336, %v337
        %v339 = vrot.slane %v338, 1
        %v340 = vmax.f32 %v338, %v339
        %s341 = vtos %v340
        %v342 = vstv %s341
        %343 = vst [vmem:[%s158] sm:$0xff] %v342
        %s344 = sand.u32 %s87, 1
        %s345 = scalar_lea.sflag [#allocation3], %s344
        %s346 = sand.u32 %s87, 1
        %s347 = smul.addr %s346, 8
        %s348 = scalar_lea.vmem [#allocation2], %s347
        // Predicated region
        $region29: #{tpu_custom_call.1} parent=27 // pred_check
          %p349 = pneg %p97
        $region30: #{tpu_custom_call.1} parent=27 // pred_check_branch
          %351 = sbr.rel (%p349) target = $region32
        $region31: #{tpu_custom_call.1} parent=27 // pred_region
          %353 = vsyncadd %s345, 0
          %s354 = sadd.s32 %s21, %s20
          %s355 = smul.addr %s354, 8
          %s356 = scalar_lea.hbm %s2, %s355
          %s358 = sshll.u32 %s348, 4
          %s359 = int_to_ptr.vmem [resolvable:$true] %s358
          %s360 = sshll.u32 %s356, 4
          %s361 = int_to_ptr.hbm [resolvable:$true] %s360
          %363 = dma.vmem_to_hbm [thread:$0]  %s359, 128, %s361, %s345
        $region32: #{tpu_custom_call.1} parent=27 // pred_fallthru
          _
      $region28: #{tpu_custom_call.1} parent=5 // pred_fallthru
        _
      %p364 = scmp.le.s32.totalorder 2, %s11
      // Predicated region
      $region33: #{tpu_custom_call.1} parent=5 // pred_check
        %p365 = pneg %p364
      $region34: #{tpu_custom_call.1} parent=5 // pred_check_branch
        %367 = sbr.rel (%p365) target = $region36
      $region35: #{tpu_custom_call.1} parent=5 // pred_region
        %s368 = ssub.s32 %s11, 2
        // Predicated region
        $region37: #{tpu_custom_call.1} parent=35 // pred_check
          %p369 = pneg %p103
        $region38: #{tpu_custom_call.1} parent=35 // pred_check_branch
          %371 = sbr.rel (%p369) target = $region40
        $region39: #{tpu_custom_call.1} parent=35 // pred_region
          %s372 = sand.u32 %s88, 1
          %s373 = scalar_lea.sflag [#allocation3], %s372
          %s374 = sand.u32 %s88, 1
          %s375 = smul.addr %s374, 8
          %s376 = scalar_lea.vmem [#allocation2], %s375
          %378 = dma.done %s373, 128
        $region40: #{tpu_custom_call.1} parent=35 // pred_fallthru
          _
      $region36: #{tpu_custom_call.1} parent=5 // pred_fallthru
        _
    $region6: #{tpu_custom_call.1} parent=1 // loop_footer
      %s15 = sadd.s32 1, %s11
    $region7: #{tpu_custom_call.1} parent=1 // loop_footer_branch
      %10 = sbr.rel target = $region3
    $region8: #{tpu_custom_call.1} parent=1 // loop_exit
      _
    %379 = vsyncpa [#allocation3], 1
    %s380 = scalar_lea.sflag [#allocation3], 1
    %381 = vsyncpa %s380, 1

</llo_original>
